<compile_context>
chip_gen: v7x
topology: tpu7x:2x2x1
jax: 0.10.0
libtpu: 0.0.40
codegen_flags: <defaults>
</compile_context>

<pallas_src>
import jax
import jax.numpy as jnp
from jax.experimental import pallas as pl
from jax.experimental.pallas import tpu as pltpu

# ImageNet normalization constants from the PyTorch module.
_MEAN = (0.485, 0.456, 0.406)
_STD = (0.229, 0.224, 0.225)
# Baked affine form:  (x - mean) / std  ==  x * (1/std) + (-mean/std)
_INV_STD = tuple(1.0 / s for s in _STD)
_BIAS = tuple(-m / s for m, s in zip(_MEAN, _STD))

_LANE = 128            # TPU lane width
_MAX_LANES = 2048      # max lane-dense row length (multiple of 128)
_MAX_ROWS_CAP = 512    # hard cap on sublane rows per block
_BYTES_PER_ELEM = 16   # HBM traffic per input element: 4 B read + 12 B written


def _round_up(a, b):
    return (a + b - 1) // b * b


def _cdiv(a, b):
    return -(-a // b)


def _vmem_budget_bytes():
    """Combined (in+out) bytes per grid step; x2 double-buffering must fit the
    default scoped-VMEM limit (16 MiB on v5e, 32 MiB on v6e/v7x)."""
    try:
        kind = jax.devices()[0].device_kind.lower()
    except Exception:
        kind = ""
    if ("v6" in kind) or ("trillium" in kind) or ("v7" in kind):
        return 8 * 1024 * 1024   # x2 buffers = 16 MiB < 32 MiB default scoped
    return 4 * 1024 * 1024       # v5e / unknown: x2 = 8 MiB < 16 MiB default scoped


def _choose_lanes(S):
    """Pick lane width L. Prefer a multiple-of-128 divisor of S (no pad/crop)."""
    for k in range(min(_MAX_LANES, S) // _LANE, 0, -1):
        L = k * _LANE
        if S % L == 0:
            return L, S // L, 0
    # Fallback (rare shapes): pad the flattened spatial dim.
    L = min(_round_up(S, _LANE), _MAX_LANES)
    n_rows = _cdiv(S, L)
    return L, n_rows, n_rows * L - S


def _choose_blocks(N, n_rows, L, budget_bytes):
    """Pick (B_tile, R): batch images and sublane rows per block."""
    budget_elems = max(budget_bytes // _BYTES_PER_ELEM, 8 * L)
    max_R = max(8, min(_MAX_ROWS_CAP, (budget_elems // L) // 8 * 8))

    if n_rows <= max_R:
        R = n_rows                      # R == full row dim: (8,128) rule waived
        B_tile = int(max(1, min(N, budget_elems // max(R * L, 1))))
        # Keep >= ~8 grid steps so megacore sharding / double-buffering have work.
        B_tile = max(1, min(B_tile, _cdiv(N, 8)))
        # Prefer a B_tile dividing N (avoids a masked partial batch block).
        for bt in range(B_tile, max(1, B_tile // 2), -1):
            if N % bt == 0:
                B_tile = bt
                break
    else:
        B_tile = 1
        R = 0
        for r in range(max_R, 7, -8):   # prefer an exact divisor of n_rows
            if n_rows % r == 0:
                R = r
                break
        if R == 0:
            R = max_R                   # partial last row block (masked by Pallas)

    # A 1-2 step grid leaves a v7x TensorCore idle and never fills the pipeline:
    # split rows when there is enough work to be worth it.
    steps = _cdiv(N, B_tile) * _cdiv(n_rows, R)
    if steps < 8 and B_tile == 1 and n_rows >= 16 and n_rows * L >= 32768:
        want_rb = min(_cdiv(8, N), n_rows // 8)
        if want_rb > 1:
            R = _round_up(_cdiv(n_rows, want_rb), 8)
    return B_tile, R


def _normalize_kernel(x_ref, o_ref):
    # x_ref: (B_tile, 1, R, L)  -- single input channel tile
    # o_ref: (B_tile, 3, R, L)  -- all three output channels for the same tile
    x = x_ref[...]  # one load feeds all 3 channels
    o_ref[:, 0:1, :, :] = (x * _INV_STD[0] + _BIAS[0]).astype(o_ref.dtype)
    o_ref[:, 1:2, :, :] = (x * _INV_STD[1] + _BIAS[1]).astype(o_ref.dtype)
    o_ref[:, 2:3, :, :] = (x * _INV_STD[2] + _BIAS[2]).astype(o_ref.dtype)


def classifier_inputs(x, *, out_dtype=None):
    """Pallas equivalent of ClassifierInputs.forward.

    x: float32 [N, 1, H, W]  ->  [N, 3, H, W]  (out_dtype defaults to x.dtype,
    matching the PyTorch module; pass jnp.bfloat16 to cut write traffic if the
    consumer tolerates it).
    """
    N, C, H, W = x.shape
    assert C == 1, "expand([-1, 3, -1, -1]) requires a singleton channel dim"
    out_dtype = x.dtype if out_dtype is None else out_dtype
    S = H * W

    L, n_rows, pad = _choose_lanes(S)
    B_tile, R = _choose_blocks(N, n_rows, L, _vmem_budget_bytes())

    x_flat = x.reshape(N, 1, S)
    if pad:
        x_flat = jnp.pad(x_flat, ((0, 0), (0, 0), (0, pad)))
    x_tiled = x_flat.reshape(N, 1, n_rows, L)   # layout-trivial reshape when pad == 0

    grid = (_cdiv(N, B_tile), _cdiv(n_rows, R))

    out_tiled = pl.pallas_call(
        _normalize_kernel,
        out_shape=jax.ShapeDtypeStruct((N, 3, n_rows, L), out_dtype),
        grid=grid,
        in_specs=[pl.BlockSpec((B_tile, 1, R, L), lambda b, r: (b, 0, r, 0))],
        out_specs=pl.BlockSpec((B_tile, 3, R, L), lambda b, r: (b, 0, r, 0)),
        compiler_params=pltpu.CompilerParams(
            dimension_semantics=("parallel", "parallel")
        ),
    )(x_tiled)

    if pad:
        out = out_tiled.reshape(N, 3, n_rows * L)[:, :, :S].reshape(N, 3, H, W)
    else:
        out = out_tiled.reshape(N, 3, H, W)      # pure metadata reshape, no copy
    return out


def _reference(x):
    N, _, H, W = x.shape
    mean = jnp.array(_MEAN, jnp.float32).reshape(1, 3, 1, 1)
    std = jnp.array(_STD, jnp.float32).reshape(1, 3, 1, 1)
    return (jnp.broadcast_to(x, (N, 3, H, W)) - mean) / std


if __name__ == "__main__":
    key = jax.random.PRNGKey(0)

    # Primary test: small shape implied by the module (batch=2, 1 channel, 16x16).
    x = jax.random.uniform(key, (2, 1, 16, 16), dtype=jnp.float32)
    out = jax.block_until_ready(classifier_inputs(x))
    assert out.shape == (2, 3, 16, 16)
    assert jnp.allclose(out, _reference(x), rtol=1e-5, atol=1e-5)

    # Ragged spatial size (no 128-multiple divisor of H*W) -> pad/crop fallback.
    x2 = jax.random.uniform(jax.random.PRNGKey(1), (2, 1, 9, 9), dtype=jnp.float32)
    out2 = jax.block_until_ready(classifier_inputs(x2))
    assert out2.shape == (2, 3, 9, 9)
    assert jnp.allclose(out2, _reference(x2), rtol=1e-5, atol=1e-5)

    # Single larger image -> exercises the multi-row-block / megacore row-split path.
    x3 = jax.random.uniform(jax.random.PRNGKey(2), (1, 1, 64, 512), dtype=jnp.float32)
    out3 = jax.block_until_ready(classifier_inputs(x3))
    assert out3.shape == (1, 3, 64, 512)
    assert jnp.allclose(out3, _reference(x3), rtol=1e-5, atol=1e-5)

    print("KERNEL_OK")
</pallas_src>

<mosaic_0001>
module attributes {stable_mosaic.version = 11 : i64} {
  func.func @_normalize_kernel(%arg0: i32, %arg1: i32, %arg2: memref<1x1x1x256xf32, #tpu.memory_space<vmem>>, %arg3: memref<1x3x1x256xf32, #tpu.memory_space<vmem>>) attributes {dimension_semantics = [#tpu.dimension_semantics<parallel>, #tpu.dimension_semantics<parallel>], iteration_bounds = array<i64: 2, 1>, scalar_prefetch = 0 : i64, scratch_operands = 0 : i64, tpu.core_type = #tpu.core_type<tc>, window_params = [{transform_indices = @transform_0, window_bounds = array<i64: 1, 1, 1, 256>}, {transform_indices = @transform_1, window_bounds = array<i64: 1, 3, 1, 256>}]} {
    %c0 = arith.constant 0 : index
    %c0_0 = arith.constant 0 : index
    %c0_1 = arith.constant 0 : index
    %c0_2 = arith.constant 0 : index
    %0 = vector.load %arg2[%c0, %c0_0, %c0_1, %c0_2] : memref<1x1x1x256xf32, #tpu.memory_space<vmem>>, vector<1x1x1x256xf32>
    %cst = arith.constant 4.36681223 : f32
    %1 = vector.broadcast %cst : f32 to vector<1x1x1x256xf32>
    %2 = arith.mulf %0, %1 : vector<1x1x1x256xf32>
    %cst_3 = arith.constant -2.11790395 : f32
    %3 = vector.broadcast %cst_3 : f32 to vector<1x1x1x256xf32>
    %4 = arith.addf %2, %3 : vector<1x1x1x256xf32>
    %c0_4 = arith.constant 0 : index
    %c0_5 = arith.constant 0 : index
    %c0_6 = arith.constant 0 : index
    %c0_7 = arith.constant 0 : index
    %5 = vector.load %arg3[%c0_4, %c0_5, %c0_6, %c0_7] : memref<1x3x1x256xf32, #tpu.memory_space<vmem>>, vector<1x1x1x256xf32>
    tpu.vector_store %arg3[%c0_4, %c0_5, %c0_6, %c0_7], %4 {strides = array<i32>} : memref<1x3x1x256xf32, #tpu.memory_space<vmem>>, vector<1x1x1x256xf32>,
    %cst_8 = arith.constant 4.46428585 : f32
    %6 = vector.broadcast %cst_8 : f32 to vector<1x1x1x256xf32>
    %7 = arith.mulf %0, %6 : vector<1x1x1x256xf32>
    %cst_9 = arith.constant -2.03571439 : f32
    %8 = vector.broadcast %cst_9 : f32 to vector<1x1x1x256xf32>
    %9 = arith.addf %7, %8 : vector<1x1x1x256xf32>
    %c0_10 = arith.constant 0 : index
    %c1 = arith.constant 1 : index
    %c0_11 = arith.constant 0 : index
    %c0_12 = arith.constant 0 : index
    %10 = vector.load %arg3[%c0_10, %c1, %c0_11, %c0_12] : memref<1x3x1x256xf32, #tpu.memory_space<vmem>>, vector<1x1x1x256xf32>
    tpu.vector_store %arg3[%c0_10, %c1, %c0_11, %c0_12], %9 {strides = array<i32>} : memref<1x3x1x256xf32, #tpu.memory_space<vmem>>, vector<1x1x1x256xf32>,
    %cst_13 = arith.constant 4.44444466 : f32
    %11 = vector.broadcast %cst_13 : f32 to vector<1x1x1x256xf32>
    %12 = arith.mulf %0, %11 : vector<1x1x1x256xf32>
    %cst_14 = arith.constant -1.80444443 : f32
    %13 = vector.broadcast %cst_14 : f32 to vector<1x1x1x256xf32>
    %14 = arith.addf %12, %13 : vector<1x1x1x256xf32>
    %c0_15 = arith.constant 0 : index
    %c2 = arith.constant 2 : index
    %c0_16 = arith.constant 0 : index
    %c0_17 = arith.constant 0 : index
    %15 = vector.load %arg3[%c0_15, %c2, %c0_16, %c0_17] : memref<1x3x1x256xf32, #tpu.memory_space<vmem>>, vector<1x1x1x256xf32>
    tpu.vector_store %arg3[%c0_15, %c2, %c0_16, %c0_17], %14 {strides = array<i32>} : memref<1x3x1x256xf32, #tpu.memory_space<vmem>>, vector<1x1x1x256xf32>,
    return
  }
  func.func @transform_0(%arg0: i32, %arg1: i32) -> (i32, i32, i32, i32) {
    %c0_i32 = arith.constant 0 : i32
    %c0_i32_0 = arith.constant 0 : i32
    %c0_i32_1 = arith.constant 0 : i32
    return %arg0, %c0_i32, %arg1, %c0_i32_0 : i32, i32, i32, i32
  }
  func.func @transform_1(%arg0: i32, %arg1: i32) -> (i32, i32, i32, i32) {
    %c0_i32 = arith.constant 0 : i32
    %c0_i32_0 = arith.constant 0 : i32
    %c0_i32_1 = arith.constant 0 : i32
    return %arg0, %c0_i32, %arg1, %c0_i32_0 : i32, i32, i32, i32
  }
}

</mosaic_0001>

<llo_original>
// kernel: tpu_custom_call.1
$region0: #{tpu_custom_call.1}
  #allocation0 [shape = 'u32[]', space=smem, size = 0x4, offset = 0x4, fixed_abs, tag = 'smem constant byte address 0x4 - core index']
  #allocation1 [shape = 'u32[144,128]{1,0:T(1,128)}', space=vmem, size = 0x12000, scoped, tag = 'internal scratch']
  %s0 = inlined_call_operand.hbm [shape: f32[2,1,1,256], index: 0, kind: input, shape index: {}]
  %s1 = inlined_call_operand.hbm [shape: f32[2,3,1,256], index: 1, kind: output, shape index: {}]
  %s2 = sld [smem:[#allocation0]]
  $region41: #{tpu_custom_call.1} parent=0
    _
  %s4 = ssub.s32 1, %s2
  %s5 = scalar_select 0, %s4, %s2
  $region1: #{tpu_custom_call.1} parent=0
    #allocation2 [shape = 'u8[2048]{0}', space=vmem, size = 0x800, scoped, tag = 'input window, operand 0']
    #allocation3 [shape = 's32[2]{0}', space=sflag, size = 0x8, scoped, tag = 'scoped memory for tpu_custom_call.1']
    #allocation4 [shape = 's32[2]{0}', space=sflag, size = 0x8, scoped, tag = 'scoped memory for tpu_custom_call.1']
    #allocation5 [shape = 'u8[6144]{0}', space=vmem, size = 0x1800, scoped, tag = 'output window, operand 0']
    %6 = vsyncpa [#allocation3], 0
    %s7 = scalar_lea.sflag [#allocation3], 1
    %8 = vsyncpa %s7, 0
    %9 = vsyncpa [#allocation4], 0
    %s10 = scalar_lea.sflag [#allocation4], 1
    %11 = vsyncpa %s10, 0
    loop: start=0, step=1, limit=4
    $region2: #{tpu_custom_call.1} parent=1 // loop_pre_header
      _
    $region3: #{tpu_custom_call.1} parent=1 // loop_header
      %s13 = sphi 0, %s17
      %p14 = scmp.ge.s32.totalorder %s13, 4
      %s20 = sphi 0, %s32
      %s21 = sphi 0, %s28
      %s22 = sphi 0, %s20
      %s23 = sphi 0, %s21
      %s24 = sphi 0, %s22
      %s25 = sphi 0, %s23
      %s37 = sphi 0, %s39
      %s40 = sphi 0, %s37
      %s41 = sphi 0, %s40
      %s57 = sphi 0, %s41
      %s65 = sphi 0, %s67
      %s68 = sphi 0, %s65
      %s69 = sphi 0, %s68
      %s85 = sphi 0, %s69
    $region4: #{tpu_custom_call.1} parent=1 // loop_header_branch
      %16 = sbr.rel (%p14) target = $region8
    $region5: #{tpu_custom_call.1} parent=1 // loop_body
      %s18 = ssub.s32 %s13, 1
      %s19 = ssub.s32 %s13, 2
      %s26 = sadd.s32 1, %s21
      %p27 = scmp.ge.s32.totalorder %s26, 1
      %s28 = scalar_select %p27, 0, %s26
      %s29 = sadd.s32 1, %s20
      %s30 = scalar_select %p27, %s29, %s20
      %p31 = scmp.ge.s32.totalorder %s30, 2
      %s32 = scalar_select %p31, 0, %s30
      %s33 = ssub.s32 %s20, %s32
      %s34 = ssub.s32 %s21, %s28
      %s35 = sor.u32 %s33, %s34
      %p36 = scmp.eq.s32.totalorder %s35, 0
      %s38 = sadd.s32 %s37, 1
      %s39 = scalar_select %p36, %s37, %s38
      %p42 = pneg %p36
      %p43 = scmp.eq.s32.totalorder %s13, 1
      %p44 = por %p42, %p43
      %p45 = scmp.ne.s32.totalorder %s37, %s40
      %p46 = scmp.eq.s32.totalorder %s13, 0
      %p47 = por %p45, %p46
      %p48 = scmp.ne.s32.totalorder %s37, %s40
      %p49 = scmp.eq.s32.totalorder %s18, 1
      %p50 = por %p48, %p49
      %p51 = scmp.ne.s32.totalorder %s40, %s41
      %p52 = scmp.eq.s32.totalorder %s18, 0
      %p53 = por %p51, %p52
      %p54 = scmp.ne.s32.totalorder %s40, %s41
      %p55 = scmp.eq.s32.totalorder %s19, 1
      %p56 = por %p54, %p55
      %p58 = scmp.ne.s32.totalorder %s41, %s57
      %p59 = scmp.eq.s32.totalorder %s19, 0
      %p60 = por %p58, %p59
      %s61 = ssub.s32 %s20, %s32
      %s62 = ssub.s32 %s21, %s28
      %s63 = sor.u32 %s61, %s62
      %p64 = scmp.eq.s32.totalorder %s63, 0
      %s66 = sadd.s32 %s65, 1
      %s67 = scalar_select %p64, %s65, %s66
      %p70 = pneg %p64
      %p71 = scmp.eq.s32.totalorder %s13, 1
      %p72 = por %p70, %p71
      %p73 = scmp.ne.s32.totalorder %s65, %s68
      %p74 = scmp.eq.s32.totalorder %s13, 0
      %p75 = por %p73, %p74
      %p76 = scmp.ne.s32.totalorder %s65, %s68
      %p77 = scmp.eq.s32.totalorder %s18, 1
      %p78 = por %p76, %p77
      %p79 = scmp.ne.s32.totalorder %s68, %s69
      %p80 = scmp.eq.s32.totalorder %s18, 0
      %p81 = por %p79, %p80
      %p82 = scmp.ne.s32.totalorder %s68, %s69
      %p83 = scmp.eq.s32.totalorder %s19, 1
      %p84 = por %p82, %p83
      %p86 = scmp.ne.s32.totalorder %s69, %s85
      %p87 = scmp.eq.s32.totalorder %s19, 0
      %p88 = por %p86, %p87
      %p89 = scmp.le.s32.totalorder 1, %s13
      %p90 = scmp.lt.s32.totalorder %s13, 3
      %p91 = pnand %p89, %p90
      %p92 = pneg %p91
      // Predicated region
      $region9: #{tpu_custom_call.1} parent=5 // pred_check
        _
      $region10: #{tpu_custom_call.1} parent=5 // pred_check_branch
        %94 = sbr.rel (%p91) target = $region12
      $region11: #{tpu_custom_call.1} parent=5 // pred_region
        %s95 = ssub.s32 %s13, 1
      $region12: #{tpu_custom_call.1} parent=5 // pred_fallthru
        _
      %p96 = scmp.lt.s32.totalorder %s13, 2
      // Predicated region
      $region13: #{tpu_custom_call.1} parent=5 // pred_check
        %p97 = pneg %p96
      $region14: #{tpu_custom_call.1} parent=5 // pred_check_branch
        %99 = sbr.rel (%p97) target = $region16
      $region15: #{tpu_custom_call.1} parent=5 // pred_region
        // Predicated region
        $region17: #{tpu_custom_call.1} parent=15 // pred_check
          %p100 = pneg %p47
        $region18: #{tpu_custom_call.1} parent=15 // pred_check_branch
          %102 = sbr.rel (%p100) target = $region20
        $region19: #{tpu_custom_call.1} parent=15 // pred_region
          %s103 = sand.u32 %s37, 1
          %s104 = scalar_lea.sflag [#allocation3], %s103
          %s105 = sand.u32 %s37, 1
          %s106 = smul.addr %s105, 2
          %s107 = scalar_lea.vmem [#allocation2], %s106
          %s109 = ssub.s32 32, 32
          %110 = vsyncadd %s104, %s109
          %s111 = smul.addr %s21, 2
          %s112 = smul.addr %s20, 2
          %s113 = sadd.s32 %s111, %s112
          %s114 = smul.addr %s113, 16
          %s115 = scalar_lea.hbm %s0, %s114
          %s117 = sshll.u32 %s107, 4
          %s118 = int_to_ptr.vmem [resolvable:$true] %s117
          %120 = dma.hbm_to_vmem [thread:$0]  %s115, 32, %s118, %s104
        $region20: #{tpu_custom_call.1} parent=15 // pred_fallthru
          _
      $region16: #{tpu_custom_call.1} parent=5 // pred_fallthru
        _
      %p121 = scmp.le.s32.totalorder 1, %s13
      %p122 = scmp.lt.s32.totalorder %s13, 3
      %p123 = pnand %p121, %p122
      %p124 = pneg %p123
      // Predicated region
      $region21: #{tpu_custom_call.1} parent=5 // pred_check
        _
      $region22: #{tpu_custom_call.1} parent=5 // pred_check_branch
        %126 = sbr.rel (%p123) target = $region24
      $region23: #{tpu_custom_call.1} parent=5 // pred_region
        %s127 = ssub.s32 %s13, 1
        %s128 = sand.u32 %s40, 1
        %s129 = scalar_lea.sflag [#allocation3], %s128
        %s130 = sand.u32 %s40, 1
        %s131 = smul.addr %s130, 2
        %s132 = scalar_lea.vmem [#allocation2], %s131
        // Predicated region
        $region25: #{tpu_custom_call.1} parent=23 // pred_check
          %p133 = pneg %p53
        $region26: #{tpu_custom_call.1} parent=23 // pred_check_branch
          %135 = sbr.rel (%p133) target = $region28
        $region27: #{tpu_custom_call.1} parent=23 // pred_region
          %136 = dma.done %s129, 32
        $region28: #{tpu_custom_call.1} parent=23 // pred_fallthru
          _
        %s137 = sand.u32 %s40, 1
        %s138 = scalar_lea.sflag [#allocation3], %s137
        %s139 = sand.u32 %s40, 1
        %s140 = smul.addr %s139, 2
        %s141 = scalar_lea.vmem [#allocation2], %s140
        %p142 = pneg %p53
        %p143 = pneg %p50
        %p144 = pneg %p81
        %p145 = pneg %p78
        %s146 = sand.u32 %s68, 1
        %s147 = scalar_lea.sflag [#allocation4], %s146
        %s148 = sand.u32 %s68, 1
        %s149 = smul.addr %s148, 6
        %s150 = scalar_lea.vmem [#allocation5], %s149
        %v151 = vld [vmem:[%s132] sm:$0x3]
        %v152 = vmul.f32 %v151, 4.366812
        %v153 = vadd.f32 %v152, -2.117904
        %v154 = vlaneseq
        %vm155 = vcmp.ge.s32.totalorder %v154, 0
        %vm156 = vcmp.lt.s32.totalorder %v154, 256
        %vm157 = vmand %vm155, %vm156
        %158 = vst.msk [vmem:[%s150] sm:$0x3] %vm157, %v153
        %v159 = vmul.f32 %v151, 4.464286
        %v160 = vadd.f32 %v159, -2.0357144
        %s161 = scalar_lea.vmem %s150, 2 [#allocation5]
        %162 = vst.msk [vmem:[%s161] sm:$0x3] %vm157, %v160
        %v163 = vmul.f32 %v151, 4.4444447
        %v164 = vadd.f32 %v163, -1.8044444
        %s165 = scalar_lea.vmem %s150, 4 [#allocation5]
        %166 = vst.msk [vmem:[%s165] sm:$0x3] %vm157, %v164
        %s167 = sand.u32 %s68, 1
        %s168 = scalar_lea.sflag [#allocation4], %s167
        %s169 = sand.u32 %s68, 1
        %s170 = smul.addr %s169, 6
        %s171 = scalar_lea.vmem [#allocation5], %s170
        // Predicated region
        $region29: #{tpu_custom_call.1} parent=23 // pred_check
          %p172 = pneg %p78
        $region30: #{tpu_custom_call.1} parent=23 // pred_check_branch
          %174 = sbr.rel (%p172) target = $region32
        $region31: #{tpu_custom_call.1} parent=23 // pred_region
          %s176 = ssub.s32 96, 96
          %177 = vsyncadd %s168, %s176
          %s178 = smul.addr %s23, 2
          %s179 = smul.addr %s22, 6
          %s180 = sadd.s32 %s178, %s179
          %s181 = smul.addr %s180, 16
          %s182 = scalar_lea.hbm %s1, %s181
          %s183 = sshll.u32 %s171, 4
          %s184 = int_to_ptr.vmem [resolvable:$true] %s183
          %189 = dma.vmem_to_hbm [thread:$0]  %s184, 96, %s182, %s168, 32, 32, 2
        $region32: #{tpu_custom_call.1} parent=23 // pred_fallthru
          _
      $region24: #{tpu_custom_call.1} parent=5 // pred_fallthru
        _
      %p190 = scmp.le.s32.totalorder 2, %s13
      // Predicated region
      $region33: #{tpu_custom_call.1} parent=5 // pred_check
        %p191 = pneg %p190
      $region34: #{tpu_custom_call.1} parent=5 // pred_check_branch
        %193 = sbr.rel (%p191) target = $region36
      $region35: #{tpu_custom_call.1} parent=5 // pred_region
        %s194 = ssub.s32 %s13, 2
        // Predicated region
        $region37: #{tpu_custom_call.1} parent=35 // pred_check
          %p195 = pneg %p84
        $region38: #{tpu_custom_call.1} parent=35 // pred_check_branch
          %197 = sbr.rel (%p195) target = $region40
        $region39: #{tpu_custom_call.1} parent=35 // pred_region
          %s198 = sand.u32 %s69, 1
          %s199 = scalar_lea.sflag [#allocation4], %s198
          %s200 = sand.u32 %s69, 1
          %s201 = smul.addr %s200, 6
          %s202 = scalar_lea.vmem [#allocation5], %s201
          %203 = dma.done %s199, 96
        $region40: #{tpu_custom_call.1} parent=35 // pred_fallthru
          _
      $region36: #{tpu_custom_call.1} parent=5 // pred_fallthru
        _
    $region6: #{tpu_custom_call.1} parent=1 // loop_footer
      %s17 = sadd.s32 1, %s13
    $region7: #{tpu_custom_call.1} parent=1 // loop_footer_branch
      %12 = sbr.rel target = $region3
    $region8: #{tpu_custom_call.1} parent=1 // loop_exit
      _
    %204 = vsyncpa [#allocation3], 1
    %s205 = scalar_lea.sflag [#allocation3], 1
    %206 = vsyncpa %s205, 1
    %207 = vsyncpa [#allocation4], 1
    %s208 = scalar_lea.sflag [#allocation4], 1
    %209 = vsyncpa %s208, 1

</llo_original>
